<compile_context>
chip_gen: v7x
topology: tpu7x:2x2x1
jax: 0.10.0
libtpu: 0.0.40
codegen_flags: <defaults>
</compile_context>

<pallas_src>
import functools
from typing import Tuple

import jax
import jax.numpy as jnp
from jax.experimental import pallas as pl
from jax.experimental.pallas import tpu as pltpu


_LANE = 128      # lane width: last block dim must be a multiple (or full dim)
_SUBLANE = 8     # sublane width: second-to-last block dim multiple (or full dim)


def _round_up(n: int, m: int) -> int:
    return ((n + m - 1) // m) * m


def _fused_mlp_kernel(x_ref, *refs, num_layers: int, out_features: int):
    """Whole MLP in one kernel body.

    refs = (w1, b1, w2, b2, ..., wN, bN, out_ref).

    Weights are pre-transposed to (Din, Dout_pad) with zero padding, so padded
    lanes stay exactly zero through dot + bias + tanh and contribute nothing to
    later layers.  Intermediates live entirely in vregs/VMEM; matmul operands
    are cast to the packed weight dtype (bf16 by default) while accumulation,
    bias add and tanh remain f32.
    """
    o_ref = refs[-1]
    h = x_ref[...].astype(jnp.float32)
    for i in range(num_layers):
        w = refs[2 * i][...]
        b = refs[2 * i + 1][...]          # (1, Dout_pad) f32
        h = jnp.dot(h.astype(w.dtype), w, preferred_element_type=jnp.float32) + b
        if i < num_layers - 1:
            h = jnp.tanh(h)               # f32 tanh (v5e: no bf16 EUP path)
    # Store only the true output features (lane-masked store, but 16x fewer
    # HBM bytes than a 128-padded slab at out_features=8).
    o_ref[...] = h[:, :out_features].astype(o_ref.dtype)


def init_mlp_params(key, sizes: Tuple[int, ...], dtype=jnp.float32):
    """Deterministic init mimicking nn.Linear: W (out, in), b (out,)."""
    params = []
    for i in range(len(sizes) - 1):
        fan_in, fan_out = sizes[i], sizes[i + 1]
        key, kw, kb = jax.random.split(key, 3)
        bound = 1.0 / (fan_in ** 0.5)
        W = jax.random.uniform(kw, (fan_out, fan_in), dtype, -bound, bound)
        b = jax.random.uniform(kb, (fan_out,), dtype, -bound, bound)
        params.append((W, b))
    return params


def prepare_params(params, compute_dtype=jnp.bfloat16):
    """One-time packing OUTSIDE the hot path.

    * W (out, in) -> transposed to (Din, Dout) with Dout zero-padded to a
      multiple of 128.  Layer 0 keeps the TRUE Din (so x never needs padding);
      layer i>0's Din equals the previous layer's padded Dout.
    * Weights stored in `compute_dtype` (bf16 default) for MXU throughput and
      halved weight DMA / VMEM; biases stay f32 (added to the f32 accumulator).
    """
    packed = []
    prev_width = params[0][0].shape[1]            # true input features
    for (W, b) in params:
        dout, din = W.shape
        assert din <= prev_width
        dout_p = _round_up(dout, _LANE)           # TODO(synk): pad to 256 on v6e/v7x once true dims reach 128+
        w_t = jnp.zeros((prev_width, dout_p), compute_dtype)
        w_t = w_t.at[:din, :dout].set(W.T.astype(compute_dtype))
        b_p = jnp.zeros((1, dout_p), jnp.float32).at[0, :dout].set(b.astype(jnp.float32))
        packed.append((w_t, b_p))
        prev_width = dout_p
    in_features = params[0][0].shape[1]
    out_features = params[-1][0].shape[0]
    return packed, in_features, out_features


def _pick_batch_tile(batch: int, max_tile: int = 512) -> int:
    """Sublane-aligned batch tile.

    Large tiles amortise the ~0.35us per-grid-step overhead (mem-bound kernels
    go ~29% -> ~85% of HBM roofline between tile 128 and 512), while keeping
    at least 2 grid steps when possible so the 'parallel' batch axis shards
    across both TensorCores on v7x.
    """
    if batch <= _SUBLANE:
        return _SUBLANE
    tb = min(max_tile, _round_up(batch, _SUBLANE))
    if pl.cdiv(batch, tb) < 2 and batch >= 2 * _SUBLANE:
        tb = _round_up(pl.cdiv(batch, 2), _SUBLANE)
    return tb


def mlp_forward_fused(x, packed_params, in_features: int, out_features: int,
                      *, batch_tile: int = None):
    """Forward pass: one pallas_call for the whole network.

    x: (B, Din) — passed unpadded; only x and the (unpadded) output touch HBM.
    All weights / biases stay resident in VMEM across the batch-tiled,
    'parallel' grid via constant (0, 0) index maps.
    """
    B, din = x.shape
    assert din == in_features
    num_layers = len(packed_params)

    tb = batch_tile if batch_tile is not None else _pick_batch_tile(B)
    grid = (pl.cdiv(B, tb),)

    # x block: lane dim = true input width (full-array dim is legal even when
    # not a multiple of 128) -> no per-call pad/copy of x.
    in_specs = [pl.BlockSpec((tb, din), lambda i: (i, 0))]
    flat_args = [x]
    for (w_t, b_p) in packed_params:
        # Constant (0, 0) index maps keep weights / biases VMEM-resident.
        in_specs.append(pl.BlockSpec(w_t.shape, lambda i: (0, 0)))
        in_specs.append(pl.BlockSpec(b_p.shape, lambda i: (0, 0)))
        flat_args.extend([w_t, b_p])

    # Output emitted unpadded: (tb, out_features) block over (B, out_features).
    out_spec = pl.BlockSpec((tb, out_features), lambda i: (i, 0))

    # Explicit VMEM budget: BlockSpec pipelining double-buffers every operand
    # (even the constant-index weights), so budget 2x each plus f32
    # intermediates and headroom.  Keeps compiling past v5e's 16 MiB scoped
    # default and within v7x's 64 MiB physical VMEM as the template scales.
    db = 2
    est = db * (tb * din + tb * out_features) * x.dtype.itemsize
    for (w_t, b_p) in packed_params:
        est += db * (w_t.size * w_t.dtype.itemsize + b_p.size * b_p.dtype.itemsize)
        est += tb * w_t.shape[1] * 4               # f32 intermediate per layer
    vmem_limit = int(min(64 * 2 ** 20, max(est + 4 * 2 ** 20, 16 * 2 ** 20)))

    kernel = functools.partial(_fused_mlp_kernel,
                               num_layers=num_layers,
                               out_features=out_features)
    return pl.pallas_call(
        kernel,
        out_shape=jax.ShapeDtypeStruct((B, out_features), x.dtype),
        grid_spec=pl.GridSpec(grid=grid, in_specs=in_specs, out_specs=out_spec),
        compiler_params=pltpu.CompilerParams(
            dimension_semantics=("parallel",),     # shards batch across TCs on v7x
            vmem_limit_bytes=vmem_limit,
        ),
    )(*flat_args)


def mlp_reference(x, params):
    n = len(params)
    for i, (W, b) in enumerate(params):
        x = x @ W.T + b
        if i < n - 1:
            x = jnp.tanh(x)
    return x


if __name__ == "__main__":
    sizes = (16, 32, 64, 8)   # MLP(sizes=(16, 32, 64, 8), bias=True, act=nn.Tanh)
    batch = 8

    key = jax.random.PRNGKey(0)
    key, kx = jax.random.split(key)
    x = jax.random.normal(kx, (batch, sizes[0]), jnp.float32)

    params = init_mlp_params(key, sizes)
    ref = mlp_reference(x, params)

    # --- f32 packing: exact-precision check against the reference ---------
    packed_f32, in_feat, out_feat = prepare_params(params, compute_dtype=jnp.float32)
    out_f32 = jax.block_until_ready(mlp_forward_fused(x, packed_f32, in_feat, out_feat))
    assert out_f32.shape == (batch, sizes[-1])
    assert jnp.allclose(out_f32, ref, atol=1e-5, rtol=1e-5), "f32 mismatch vs reference"

    # --- bf16 packing (default / fast path): bf16 MXU operands, f32 accum --
    packed_bf16, in_feat, out_feat = prepare_params(params, compute_dtype=jnp.bfloat16)
    out_bf16 = jax.block_until_ready(mlp_forward_fused(x, packed_bf16, in_feat, out_feat))
    assert out_bf16.shape == (batch, sizes[-1])
    assert jnp.allclose(out_bf16, ref, atol=5e-2, rtol=5e-2), "bf16 mismatch vs reference"

    print("KERNEL_OK")
</pallas_src>

<mosaic_0001>
module attributes {stable_mosaic.version = 11 : i64} {
  func.func @_fused_mlp_kernel(%arg0: i32, %arg1: memref<8x16xf32, #tpu.memory_space<vmem>>, %arg2: memref<16x128xf32, #tpu.memory_space<vmem>>, %arg3: memref<1x128xf32, #tpu.memory_space<vmem>>, %arg4: memref<128x128xf32, #tpu.memory_space<vmem>>, %arg5: memref<1x128xf32, #tpu.memory_space<vmem>>, %arg6: memref<128x128xf32, #tpu.memory_space<vmem>>, %arg7: memref<1x128xf32, #tpu.memory_space<vmem>>, %arg8: memref<8x8xf32, #tpu.memory_space<vmem>>) attributes {dimension_semantics = [#tpu.dimension_semantics<parallel>], iteration_bounds = array<i64: 1>, scalar_prefetch = 0 : i64, scratch_operands = 0 : i64, tpu.core_type = #tpu.core_type<tc>, window_params = [{transform_indices = @transform_0, window_bounds = array<i64: 8, 16>}, {pipeline_mode = #tpu.pipeline_mode<synchronous>, transform_indices = @transform_1, window_bounds = array<i64: 16, 128>}, {pipeline_mode = #tpu.pipeline_mode<synchronous>, transform_indices = @transform_2, window_bounds = array<i64: 1, 128>}, {pipeline_mode = #tpu.pipeline_mode<synchronous>, transform_indices = @transform_3, window_bounds = array<i64: 128, 128>}, {pipeline_mode = #tpu.pipeline_mode<synchronous>, transform_indices = @transform_4, window_bounds = array<i64: 1, 128>}, {pipeline_mode = #tpu.pipeline_mode<synchronous>, transform_indices = @transform_5, window_bounds = array<i64: 128, 128>}, {pipeline_mode = #tpu.pipeline_mode<synchronous>, transform_indices = @transform_6, window_bounds = array<i64: 1, 128>}, {transform_indices = @transform_7, window_bounds = array<i64: 8, 8>}]} {
    %c0 = arith.constant 0 : index
    %c0_0 = arith.constant 0 : index
    %0 = vector.load %arg1[%c0, %c0_0] : memref<8x16xf32, #tpu.memory_space<vmem>>, vector<8x16xf32>
    %c0_1 = arith.constant 0 : index
    %c0_2 = arith.constant 0 : index
    %1 = vector.load %arg2[%c0_1, %c0_2] : memref<16x128xf32, #tpu.memory_space<vmem>>, vector<16x128xf32>
    %c0_3 = arith.constant 0 : index
    %c0_4 = arith.constant 0 : index
    %2 = vector.load %arg3[%c0_3, %c0_4] : memref<1x128xf32, #tpu.memory_space<vmem>>, vector<1x128xf32>
    %cst = arith.constant dense<0.000000e+00> : vector<8x128xf32>
    %3 = tpu.matmul %0, %1, %cst {dimension_numbers = #tpu.dot_dimension_numbers<[1], [0], [0], [1], [0, 0, 1, 1], [], []>} : vector<8x16xf32>, vector<16x128xf32>, vector<8x128xf32> -> vector<8x128xf32>
    %4 = vector.broadcast %2 : vector<1x128xf32> to vector<8x128xf32>
    %5 = arith.addf %3, %4 : vector<8x128xf32>
    %6 = math.tanh %5 : vector<8x128xf32>
    %c0_5 = arith.constant 0 : index
    %c0_6 = arith.constant 0 : index
    %7 = vector.load %arg4[%c0_5, %c0_6] : memref<128x128xf32, #tpu.memory_space<vmem>>, vector<128x128xf32>
    %c0_7 = arith.constant 0 : index
    %c0_8 = arith.constant 0 : index
    %8 = vector.load %arg5[%c0_7, %c0_8] : memref<1x128xf32, #tpu.memory_space<vmem>>, vector<1x128xf32>
    %cst_9 = arith.constant dense<0.000000e+00> : vector<8x128xf32>
    %9 = tpu.matmul %6, %7, %cst_9 {dimension_numbers = #tpu.dot_dimension_numbers<[1], [0], [0], [1], [0, 0, 1, 1], [], []>} : vector<8x128xf32>, vector<128x128xf32>, vector<8x128xf32> -> vector<8x128xf32>
    %10 = vector.broadcast %8 : vector<1x128xf32> to vector<8x128xf32>
    %11 = arith.addf %9, %10 : vector<8x128xf32>
    %12 = math.tanh %11 : vector<8x128xf32>
    %c0_10 = arith.constant 0 : index
    %c0_11 = arith.constant 0 : index
    %13 = vector.load %arg6[%c0_10, %c0_11] : memref<128x128xf32, #tpu.memory_space<vmem>>, vector<128x128xf32>
    %c0_12 = arith.constant 0 : index
    %c0_13 = arith.constant 0 : index
    %14 = vector.load %arg7[%c0_12, %c0_13] : memref<1x128xf32, #tpu.memory_space<vmem>>, vector<1x128xf32>
    %cst_14 = arith.constant dense<0.000000e+00> : vector<8x128xf32>
    %15 = tpu.matmul %12, %13, %cst_14 {dimension_numbers = #tpu.dot_dimension_numbers<[1], [0], [0], [1], [0, 0, 1, 1], [], []>} : vector<8x128xf32>, vector<128x128xf32>, vector<8x128xf32> -> vector<8x128xf32>
    %16 = vector.broadcast %14 : vector<1x128xf32> to vector<8x128xf32>
    %17 = arith.addf %15, %16 : vector<8x128xf32>
    %18 = vector.extract_strided_slice %17 {offsets = [0, 0], sizes = [8, 8], strides = [1, 1]} : vector<8x128xf32> to vector<8x8xf32>
    %c0_15 = arith.constant 0 : index
    %c0_16 = arith.constant 0 : index
    %19 = vector.load %arg8[%c0_15, %c0_16] : memref<8x8xf32, #tpu.memory_space<vmem>>, vector<8x8xf32>
    tpu.vector_store %arg8[%c0_15, %c0_16], %18 {strides = array<i32>} : memref<8x8xf32, #tpu.memory_space<vmem>>, vector<8x8xf32>,
    return
  }
  func.func @transform_0(%arg0: i32) -> (i32, i32) {
    %c0_i32 = arith.constant 0 : i32
    %c0_i32_0 = arith.constant 0 : i32
    return %arg0, %c0_i32 : i32, i32
  }
  func.func @transform_1(%arg0: i32) -> (i32, i32) {
    %c0_i32 = arith.constant 0 : i32
    %c0_i32_0 = arith.constant 0 : i32
    %c0_i32_1 = arith.constant 0 : i32
    return %c0_i32, %c0_i32_0 : i32, i32
  }
  func.func @transform_2(%arg0: i32) -> (i32, i32) {
    %c0_i32 = arith.constant 0 : i32
    %c0_i32_0 = arith.constant 0 : i32
    %c0_i32_1 = arith.constant 0 : i32
    return %c0_i32, %c0_i32_0 : i32, i32
  }
  func.func @transform_3(%arg0: i32) -> (i32, i32) {
    %c0_i32 = arith.constant 0 : i32
    %c0_i32_0 = arith.constant 0 : i32
    %c0_i32_1 = arith.constant 0 : i32
    return %c0_i32, %c0_i32_0 : i32, i32
  }
  func.func @transform_4(%arg0: i32) -> (i32, i32) {
    %c0_i32 = arith.constant 0 : i32
    %c0_i32_0 = arith.constant 0 : i32
    %c0_i32_1 = arith.constant 0 : i32
    return %c0_i32, %c0_i32_0 : i32, i32
  }
  func.func @transform_5(%arg0: i32) -> (i32, i32) {
    %c0_i32 = arith.constant 0 : i32
    %c0_i32_0 = arith.constant 0 : i32
    %c0_i32_1 = arith.constant 0 : i32
    return %c0_i32, %c0_i32_0 : i32, i32
  }
  func.func @transform_6(%arg0: i32) -> (i32, i32) {
    %c0_i32 = arith.constant 0 : i32
    %c0_i32_0 = arith.constant 0 : i32
    %c0_i32_1 = arith.constant 0 : i32
    return %c0_i32, %c0_i32_0 : i32, i32
  }
  func.func @transform_7(%arg0: i32) -> (i32, i32) {
    %c0_i32 = arith.constant 0 : i32
    %c0_i32_0 = arith.constant 0 : i32
    return %arg0, %c0_i32 : i32, i32
  }
}

</mosaic_0001>

<llo_original>
// kernel: tpu_custom_call.1
$region0: #{tpu_custom_call.1}
  #allocation0 [shape = 'u32[]', space=smem, size = 0x4, offset = 0x4, fixed_abs, tag = 'smem constant byte address 0x4 - core index']
  #allocation1 [shape = 'u32[144,128]{1,0:T(1,128)}', space=vmem, size = 0x12000, scoped, tag = 'internal scratch']
  %s0 = inlined_call_operand.hbm [shape: f32[8,16], index: 0, kind: input, shape index: {}]
  %s1 = inlined_call_operand.hbm [shape: f32[16,128], index: 1, kind: input, shape index: {}]
  %s2 = inlined_call_operand.vmem [shape: f32[1,128], index: 2, kind: input, shape index: {}]
  %s3 = inlined_call_operand.hbm [shape: f32[128,128], index: 3, kind: input, shape index: {}]
  %s4 = inlined_call_operand.vmem [shape: f32[1,128], index: 4, kind: input, shape index: {}]
  %s5 = inlined_call_operand.hbm [shape: f32[128,128], index: 5, kind: input, shape index: {}]
  %s6 = inlined_call_operand.vmem [shape: f32[1,128], index: 6, kind: input, shape index: {}]
  %s7 = inlined_call_operand.hbm [shape: f32[8,8], index: 7, kind: output, shape index: {}]
  %s8 = sld [smem:[#allocation0]]
  $region54: #{tpu_custom_call.1} parent=0
    _
  %s10 = ssub.s32 1, %s8
  %s11 = scalar_select 0, %s10, %s8
  $region1: #{tpu_custom_call.1} parent=0
    #allocation2 [shape = 'u8[4096]{0}', space=vmem, size = 0x1000, scoped, tag = 'input window, operand 0, single buffered']
    #allocation3 [shape = 's32[1]{0}', space=sflag, size = 0x4, scoped, tag = 'scoped memory for tpu_custom_call.1']
    #allocation4 [shape = 's32[1]{0}', space=sflag, size = 0x4, scoped, tag = 'scoped memory for tpu_custom_call.1']
    #allocation5 [shape = 'u8[8192]{0}', space=vmem, size = 0x2000, scoped, tag = 'input window, operand 1, single buffered']
    #allocation6 [shape = 's32[1]{0}', space=sflag, size = 0x4, scoped, tag = 'scoped memory for tpu_custom_call.1']
    #allocation7 [shape = 'u8[65536]{0}', space=vmem, size = 0x10000, scoped, tag = 'input window, operand 3, single buffered']
    #allocation8 [shape = 'u8[65536]{0}', space=vmem, size = 0x10000, scoped, tag = 'input window, operand 5, single buffered']
    #allocation9 [shape = 's32[1]{0}', space=sflag, size = 0x4, scoped, tag = 'scoped memory for tpu_custom_call.1']
    #allocation10 [shape = 'u8[4096]{0}', space=vmem, size = 0x1000, scoped, tag = 'output window, operand 0, single buffered']
    %12 = vsyncpa [#allocation3], 0
    %13 = vsyncpa [#allocation6], 0
    %14 = vsyncpa [#allocation9], 0
    %15 = vsyncpa [#allocation4], 0
    // Predicated region
    $region2: #{tpu_custom_call.1} parent=1 // pred_check
      _
    $region3: #{tpu_custom_call.1} parent=1 // pred_check_branch
      %17 = sbr.rel (0) target = $region5
    $region4: #{tpu_custom_call.1} parent=1 // pred_region
      %s19 = ssub.s32 128, 128
      %20 = vsyncadd [#allocation3], %s19
      %s22 = sshll.u32 [#allocation2], 4
      %s23 = int_to_ptr.vmem [resolvable:$true] %s22
      %25 = dma.hbm_to_vmem [thread:$0]  %s0, 128, %s23, [#allocation3]
    $region5: #{tpu_custom_call.1} parent=1 // pred_fallthru
      _
    // Predicated region
    $region6: #{tpu_custom_call.1} parent=1 // pred_check
      _
    $region7: #{tpu_custom_call.1} parent=1 // pred_check_branch
      %27 = sbr.rel (0) target = $region9
    $region8: #{tpu_custom_call.1} parent=1 // pred_region
      %s29 = ssub.s32 256, 256
      %30 = vsyncadd [#allocation6], %s29
      %s31 = sshll.u32 [#allocation5], 4
      %s32 = int_to_ptr.vmem [resolvable:$true] %s31
      %37 = dma.hbm_to_vmem [thread:$0]  %s1, 256, %s32, [#allocation6], 128, 128, 8
    $region9: #{tpu_custom_call.1} parent=1 // pred_fallthru
      _
    // Predicated region
    $region10: #{tpu_custom_call.1} parent=1 // pred_check
      _
    $region11: #{tpu_custom_call.1} parent=1 // pred_check_branch
      %39 = sbr.rel (0) target = $region13
    $region12: #{tpu_custom_call.1} parent=1 // pred_region
      _
    $region13: #{tpu_custom_call.1} parent=1 // pred_fallthru
      _
    // Predicated region
    $region14: #{tpu_custom_call.1} parent=1 // pred_check
      _
    $region15: #{tpu_custom_call.1} parent=1 // pred_check_branch
      %41 = sbr.rel (0) target = $region17
    $region16: #{tpu_custom_call.1} parent=1 // pred_region
      %s43 = ssub.s32 2048, 2048
      %44 = vsyncadd [#allocation6], %s43
      %s45 = sshll.u32 [#allocation7], 4
      %s46 = int_to_ptr.vmem [resolvable:$true] %s45
      %51 = dma.hbm_to_vmem [thread:$0]  %s3, 2048, %s46, [#allocation6], 128, 128, 8
    $region17: #{tpu_custom_call.1} parent=1 // pred_fallthru
      _
    // Predicated region
    $region18: #{tpu_custom_call.1} parent=1 // pred_check
      _
    $region19: #{tpu_custom_call.1} parent=1 // pred_check_branch
      %53 = sbr.rel (0) target = $region21
    $region20: #{tpu_custom_call.1} parent=1 // pred_region
      _
    $region21: #{tpu_custom_call.1} parent=1 // pred_fallthru
      _
    // Predicated region
    $region22: #{tpu_custom_call.1} parent=1 // pred_check
      _
    $region23: #{tpu_custom_call.1} parent=1 // pred_check_branch
      %55 = sbr.rel (0) target = $region25
    $region24: #{tpu_custom_call.1} parent=1 // pred_region
      %s57 = ssub.s32 2048, 2048
      %58 = vsyncadd [#allocation9], %s57
      %s59 = sshll.u32 [#allocation8], 4
      %s60 = int_to_ptr.vmem [resolvable:$true] %s59
      %65 = dma.hbm_to_vmem [thread:$0]  %s5, 2048, %s60, [#allocation9], 128, 128, 8
    $region25: #{tpu_custom_call.1} parent=1 // pred_fallthru
      _
    // Predicated region
    $region26: #{tpu_custom_call.1} parent=1 // pred_check
      _
    $region27: #{tpu_custom_call.1} parent=1 // pred_check_branch
      %67 = sbr.rel (0) target = $region29
    $region28: #{tpu_custom_call.1} parent=1 // pred_region
      _
    $region29: #{tpu_custom_call.1} parent=1 // pred_fallthru
      _
    // Predicated region
    $region30: #{tpu_custom_call.1} parent=1 // pred_check
      _
    $region31: #{tpu_custom_call.1} parent=1 // pred_check_branch
      %69 = sbr.rel (0) target = $region33
    $region32: #{tpu_custom_call.1} parent=1 // pred_region
      %70 = dma.done [#allocation3], 128
    $region33: #{tpu_custom_call.1} parent=1 // pred_fallthru
      _
    // Predicated region
    $region34: #{tpu_custom_call.1} parent=1 // pred_check
      _
    $region35: #{tpu_custom_call.1} parent=1 // pred_check_branch
      %72 = sbr.rel (0) target = $region37
    $region36: #{tpu_custom_call.1} parent=1 // pred_region
      %73 = dma.done [#allocation6], 256
    $region37: #{tpu_custom_call.1} parent=1 // pred_fallthru
      _
    // Predicated region
    $region38: #{tpu_custom_call.1} parent=1 // pred_check
      _
    $region39: #{tpu_custom_call.1} parent=1 // pred_check_branch
      %75 = sbr.rel (0) target = $region41
    $region40: #{tpu_custom_call.1} parent=1 // pred_region
      %76 = dma.done [#allocation6], 2048
    $region41: #{tpu_custom_call.1} parent=1 // pred_fallthru
      _
    // Predicated region
    $region42: #{tpu_custom_call.1} parent=1 // pred_check
      _
    $region43: #{tpu_custom_call.1} parent=1 // pred_check_branch
      %78 = sbr.rel (0) target = $region45
    $region44: #{tpu_custom_call.1} parent=1 // pred_region
      %79 = dma.done [#allocation9], 2048
    $region45: #{tpu_custom_call.1} parent=1 // pred_fallthru
      _
    %v80 = vld [vmem:[#allocation2] sm:$0xff]
    %v81 = vld [vmem:[#allocation5] sm:$0xff]
    %v82 = vld [vmem:[#allocation5 + $0x8] sm:$0xff]
    %v83 = vld [vmem:[%s2] sm:$0x1]
    %v85 = vlaneseq
    %v86 = vshrl.u32 %v85, 7
    %v87 = vsub.s32 0, %v86
    %v88 = vrot.slane %v83, %v87
    %vm90 = vcmask 130048
    %v92 = vsel %vm90, %v80, 0
    %94 = vmatprep.subr.mxu0 0.0
    %95 = vmatpush1.msra.mxu0 %v81
    %96 = vmatprep.subr.mxu0 0.0
    %97 = vmatpush1.msra.mxu0 %v82
    %98 = vmatprep.subr.mxu0 0.0
    %99 = vmatpush1.msra.mxu0 0.0
    %100 = vmatprep.subr.mxu0 0.0
    %101 = vmatpush1.msra.mxu0 0.0
    %102 = vmatprep.subr.mxu0 0.0
    %103 = vmatpush1.msra.mxu0 0.0
    %104 = vmatprep.subr.mxu0 0.0
    %105 = vmatpush1.msra.mxu0 0.0
    %106 = vmatprep.subr.mxu0 0.0
    %107 = vmatpush1.msra.mxu0 0.0
    %108 = vmatprep.subr.mxu0 0.0
    %109 = vmatpush1.msra.mxu0 0.0
    %110 = vmatprep.subr.mxu0 0.0
    %111 = vmatpush1.msra.mxu0 0.0
    %112 = vmatprep.subr.mxu0 0.0
    %113 = vmatpush1.msra.mxu0 0.0
    %114 = vmatprep.subr.mxu0 0.0
    %115 = vmatpush1.msra.mxu0 0.0
    %116 = vmatprep.subr.mxu0 0.0
    %117 = vmatpush1.msra.mxu0 0.0
    %118 = vmatprep.subr.mxu0 0.0
    %119 = vmatpush1.msra.mxu0 0.0
    %120 = vmatprep.subr.mxu0 0.0
    %121 = vmatpush1.msra.mxu0 0.0
    %122 = vmatprep.subr.mxu0 0.0
    %123 = vmatpush1.msra.mxu0 0.0
    %124 = vmatprep.subr.mxu0 0.0
    %125 = vmatpush1.msra.mxu0 0.0
    %126 = vmatprep.subr.mxu0 0.0
    %127 = vmatpush1.msra.mxu0 0.0
    %128 = vmatprep.subr.mxu0 0.0
    %129 = vmatpush1.msra.mxu0 0.0
    %130 = vmatprep.subr.mxu0 0.0
    %131 = vmatpush1.msra.mxu0 0.0
    %132 = vmatprep.subr.mxu0 0.0
    %133 = vmatpush1.msra.mxu0 0.0
    %134 = vmatprep.subr.mxu0 0.0
    %135 = vmatpush1.msra.mxu0 0.0
    %136 = vmatprep.subr.mxu0 0.0
    %137 = vmatpush1.msra.mxu0 0.0
    %138 = vmatprep.subr.mxu0 0.0
    %139 = vmatpush1.msra.mxu0 0.0
    %140 = vmatprep.subr.mxu0 0.0
    %141 = vmatpush1.msra.mxu0 0.0
    %142 = vmatprep.subr.mxu0 0.0
    %143 = vmatpush1.msra.mxu0 0.0
    %144 = vmatprep.subr.mxu0 0.0
    %145 = vmatpush1.msra.mxu0 0.0
    %146 = vmatprep.subr.mxu0 0.0
    %147 = vmatpush1.msra.mxu0 0.0
    %148 = vmatprep.subr.mxu0 0.0
    %149 = vmatpush1.msra.mxu0 0.0
    %150 = vmatprep.subr.mxu0 0.0
    %151 = vmatpush1.msra.mxu0 0.0
    %152 = vmatprep.subr.mxu0 0.0
    %153 = vmatpush1.msra.mxu0 0.0
    %154 = vmatprep.subr.mxu0 0.0
    %155 = vmatpush1.msra.mxu0 0.0
    %156 = vmatprep.subr.mxu0 0.0
    %157 = vmatpush1.msra.mxu0 0.0
    %158 = vmatprep.mubr.f32.mxu0 0.0
    %159 = vmatmul.mubr.f32.gmra.mrb[0].mxu0 %v92
    %v160 = vpop.f32.mrb[0].mxu0
    %v161 = vadd.f32 %v88, %v160
    %v162 = vpop.f32.mrb[0].mxu0
    %163 = vdwg.mxu0
    %v164 = vtanh.pop %v161
    %v165 = vld [vmem:[#allocation7] sm:$0xff]
    %v166 = vld [vmem:[#allocation7 + $0x8] sm:$0xff]
    %v167 = vld [vmem:[#allocation7 + $0x10] sm:$0xff]
    %v168 = vld [vmem:[#allocation7 + $0x18] sm:$0xff]
    %v169 = vld [vmem:[#allocation7 + $0x20] sm:$0xff]
    %v170 = vld [vmem:[#allocation7 + $0x28] sm:$0xff]
    %v171 = vld [vmem:[#allocation7 + $0x30] sm:$0xff]
    %v172 = vld [vmem:[#allocation7 + $0x38] sm:$0xff]
    %v173 = vld [vmem:[#allocation7 + $0x40] sm:$0xff]
    %v174 = vld [vmem:[#allocation7 + $0x48] sm:$0xff]
    %v175 = vld [vmem:[#allocation7 + $0x50] sm:$0xff]
    %v176 = vld [vmem:[#allocation7 + $0x58] sm:$0xff]
    %v177 = vld [vmem:[#allocation7 + $0x60] sm:$0xff]
    %v178 = vld [vmem:[#allocation7 + $0x68] sm:$0xff]
    %v179 = vld [vmem:[#allocation7 + $0x70] sm:$0xff]
    %v180 = vld [vmem:[#allocation7 + $0x78] sm:$0xff]
    %v181 = vld [vmem:[%s4] sm:$0x1]
    %v183 = vlaneseq
    %v184 = vshrl.u32 %v183, 7
    %v185 = vsub.s32 0, %v184
    %v186 = vrot.slane %v181, %v185
    %188 = vmatprep.subr.mxu0 0.0
    %189 = vmatpush1.msra.mxu0 %v165
    %190 = vmatprep.subr.mxu0 0.0
    %191 = vmatpush1.msra.mxu0 %v166
    %192 = vmatprep.subr.mxu0 0.0
    %193 = vmatpush1.msra.mxu0 %v167
    %194 = vmatprep.subr.mxu0 0.0
    %195 = vmatpush1.msra.mxu0 %v168
    %196 = vmatprep.subr.mxu0 0.0
    %197 = vmatpush1.msra.mxu0 %v169
    %198 = vmatprep.subr.mxu0 0.0
    %199 = vmatpush1.msra.mxu0 %v170
    %200 = vmatprep.subr.mxu0 0.0
    %201 = vmatpush1.msra.mxu0 %v171
    %202 = vmatprep.subr.mxu0 0.0
    %203 = vmatpush1.msra.mxu0 %v172
    %204 = vmatprep.subr.mxu0 0.0
    %205 = vmatpush1.msra.mxu0 %v173
    %206 = vmatprep.subr.mxu0 0.0
    %207 = vmatpush1.msra.mxu0 %v174
    %208 = vmatprep.subr.mxu0 0.0
    %209 = vmatpush1.msra.mxu0 %v175
    %210 = vmatprep.subr.mxu0 0.0
    %211 = vmatpush1.msra.mxu0 %v176
    %212 = vmatprep.subr.mxu0 0.0
    %213 = vmatpush1.msra.mxu0 %v177
    %214 = vmatprep.subr.mxu0 0.0
    %215 = vmatpush1.msra.mxu0 %v178
    %216 = vmatprep.subr.mxu0 0.0
    %217 = vmatpush1.msra.mxu0 %v179
    %218 = vmatprep.subr.mxu0 0.0
    %219 = vmatpush1.msra.mxu0 %v180
    %220 = vmatprep.subr.mxu0 0.0
    %221 = vmatpush1.msra.mxu0 0.0
    %222 = vmatprep.subr.mxu0 0.0
    %223 = vmatpush1.msra.mxu0 0.0
    %224 = vmatprep.subr.mxu0 0.0
    %225 = vmatpush1.msra.mxu0 0.0
    %226 = vmatprep.subr.mxu0 0.0
    %227 = vmatpush1.msra.mxu0 0.0
    %228 = vmatprep.subr.mxu0 0.0
    %229 = vmatpush1.msra.mxu0 0.0
    %230 = vmatprep.subr.mxu0 0.0
    %231 = vmatpush1.msra.mxu0 0.0
    %232 = vmatprep.subr.mxu0 0.0
    %233 = vmatpush1.msra.mxu0 0.0
    %234 = vmatprep.subr.mxu0 0.0
    %235 = vmatpush1.msra.mxu0 0.0
    %236 = vmatprep.subr.mxu0 0.0
    %237 = vmatpush1.msra.mxu0 0.0
    %238 = vmatprep.subr.mxu0 0.0
    %239 = vmatpush1.msra.mxu0 0.0
    %240 = vmatprep.subr.mxu0 0.0
    %241 = vmatpush1.msra.mxu0 0.0
    %242 = vmatprep.subr.mxu0 0.0
    %243 = vmatpush1.msra.mxu0 0.0
    %244 = vmatprep.subr.mxu0 0.0
    %245 = vmatpush1.msra.mxu0 0.0
    %246 = vmatprep.subr.mxu0 0.0
    %247 = vmatpush1.msra.mxu0 0.0
    %248 = vmatprep.subr.mxu0 0.0
    %249 = vmatpush1.msra.mxu0 0.0
    %250 = vmatprep.subr.mxu0 0.0
    %251 = vmatpush1.msra.mxu0 0.0
    %252 = vmatprep.mubr.f32.mxu0 0.0
    %253 = vmatmul.mubr.f32.gmra.mrb[0].mxu0 %v164
    %v254 = vpop.f32.mrb[0].mxu0
    %v255 = vadd.f32 %v186, %v254
    %v256 = vpop.f32.mrb[0].mxu0
    %257 = vdwg.mxu0
    %v258 = vtanh.pop %v255
    %v259 = vld [vmem:[#allocation8] sm:$0xff]
    %v260 = vld [vmem:[#allocation8 + $0x8] sm:$0xff]
    %v261 = vld [vmem:[#allocation8 + $0x10] sm:$0xff]
    %v262 = vld [vmem:[#allocation8 + $0x18] sm:$0xff]
    %v263 = vld [vmem:[#allocation8 + $0x20] sm:$0xff]
    %v264 = vld [vmem:[#allocation8 + $0x28] sm:$0xff]
    %v265 = vld [vmem:[#allocation8 + $0x30] sm:$0xff]
    %v266 = vld [vmem:[#allocation8 + $0x38] sm:$0xff]
    %v267 = vld [vmem:[#allocation8 + $0x40] sm:$0xff]
    %v268 = vld [vmem:[#allocation8 + $0x48] sm:$0xff]
    %v269 = vld [vmem:[#allocation8 + $0x50] sm:$0xff]
    %v270 = vld [vmem:[#allocation8 + $0x58] sm:$0xff]
    %v271 = vld [vmem:[#allocation8 + $0x60] sm:$0xff]
    %v272 = vld [vmem:[#allocation8 + $0x68] sm:$0xff]
    %v273 = vld [vmem:[#allocation8 + $0x70] sm:$0xff]
    %v274 = vld [vmem:[#allocation8 + $0x78] sm:$0xff]
    %v275 = vld [vmem:[%s6] sm:$0x1]
    %v277 = vlaneseq
    %v278 = vshrl.u32 %v277, 7
    %v279 = vsub.s32 0, %v278
    %v280 = vrot.slane %v275, %v279
    %282 = vmatprep.subr.mxu0 0.0
    %283 = vmatpush1.msra.mxu0 %v259
    %284 = vmatprep.subr.mxu0 0.0
    %285 = vmatpush1.msra.mxu0 %v260
    %286 = vmatprep.subr.mxu0 0.0
    %287 = vmatpush1.msra.mxu0 %v261
    %288 = vmatprep.subr.mxu0 0.0
    %289 = vmatpush1.msra.mxu0 %v262
    %290 = vmatprep.subr.mxu0 0.0
    %291 = vmatpush1.msra.mxu0 %v263
    %292 = vmatprep.subr.mxu0 0.0
    %293 = vmatpush1.msra.mxu0 %v264
    %294 = vmatprep.subr.mxu0 0.0
    %295 = vmatpush1.msra.mxu0 %v265
    %296 = vmatprep.subr.mxu0 0.0
    %297 = vmatpush1.msra.mxu0 %v266
    %298 = vmatprep.subr.mxu0 0.0
    %299 = vmatpush1.msra.mxu0 %v267
    %300 = vmatprep.subr.mxu0 0.0
    %301 = vmatpush1.msra.mxu0 %v268
    %302 = vmatprep.subr.mxu0 0.0
    %303 = vmatpush1.msra.mxu0 %v269
    %304 = vmatprep.subr.mxu0 0.0
    %305 = vmatpush1.msra.mxu0 %v270
    %306 = vmatprep.subr.mxu0 0.0
    %307 = vmatpush1.msra.mxu0 %v271
    %308 = vmatprep.subr.mxu0 0.0
    %309 = vmatpush1.msra.mxu0 %v272
    %310 = vmatprep.subr.mxu0 0.0
    %311 = vmatpush1.msra.mxu0 %v273
    %312 = vmatprep.subr.mxu0 0.0
    %313 = vmatpush1.msra.mxu0 %v274
    %314 = vmatprep.subr.mxu0 0.0
    %315 = vmatpush1.msra.mxu0 0.0
    %316 = vmatprep.subr.mxu0 0.0
    %317 = vmatpush1.msra.mxu0 0.0
    %318 = vmatprep.subr.mxu0 0.0
    %319 = vmatpush1.msra.mxu0 0.0
    %320 = vmatprep.subr.mxu0 0.0
    %321 = vmatpush1.msra.mxu0 0.0
    %322 = vmatprep.subr.mxu0 0.0
    %323 = vmatpush1.msra.mxu0 0.0
    %324 = vmatprep.subr.mxu0 0.0
    %325 = vmatpush1.msra.mxu0 0.0
    %326 = vmatprep.subr.mxu0 0.0
    %327 = vmatpush1.msra.mxu0 0.0
    %328 = vmatprep.subr.mxu0 0.0
    %329 = vmatpush1.msra.mxu0 0.0
    %330 = vmatprep.subr.mxu0 0.0
    %331 = vmatpush1.msra.mxu0 0.0
    %332 = vmatprep.subr.mxu0 0.0
    %333 = vmatpush1.msra.mxu0 0.0
    %334 = vmatprep.subr.mxu0 0.0
    %335 = vmatpush1.msra.mxu0 0.0
    %336 = vmatprep.subr.mxu0 0.0
    %337 = vmatpush1.msra.mxu0 0.0
    %338 = vmatprep.subr.mxu0 0.0
    %339 = vmatpush1.msra.mxu0 0.0
    %340 = vmatprep.subr.mxu0 0.0
    %341 = vmatpush1.msra.mxu0 0.0
    %342 = vmatprep.subr.mxu0 0.0
    %343 = vmatpush1.msra.mxu0 0.0
    %344 = vmatprep.subr.mxu0 0.0
    %345 = vmatpush1.msra.mxu0 0.0
    %346 = vmatprep.mubr.f32.mxu0 0.0
    %347 = vmatmul.mubr.f32.gmra.mrb[0].mxu0 %v258
    %v348 = vpop.f32.mrb[0].mxu0
    %v349 = vadd.f32 %v280, %v348
    %v350 = vpop.f32.mrb[0].mxu0
    %351 = vdwg.mxu0
    %vm352 = vcmask 64512
    %353 = vst.msk [vmem:[#allocation10] sm:$0xff] %vm352, %v349
    // Predicated region
    $region46: #{tpu_custom_call.1} parent=1 // pred_check
      _
    $region47: #{tpu_custom_call.1} parent=1 // pred_check_branch
      %355 = sbr.rel (0) target = $region49
    $region48: #{tpu_custom_call.1} parent=1 // pred_region
      %s357 = ssub.s32 128, 128
      %358 = vsyncadd [#allocation4], %s357
      %s360 = sshll.u32 [#allocation10], 4
      %s361 = int_to_ptr.vmem [resolvable:$true] %s360
      %363 = dma.vmem_to_hbm [thread:$0]  %s361, 128, %s7, [#allocation4]
    $region49: #{tpu_custom_call.1} parent=1 // pred_fallthru
      _
    // Predicated region
    $region50: #{tpu_custom_call.1} parent=1 // pred_check
      _
    $region51: #{tpu_custom_call.1} parent=1 // pred_check_branch
      %365 = sbr.rel (0) target = $region53
    $region52: #{tpu_custom_call.1} parent=1 // pred_region
      %366 = dma.done [#allocation4], 128
    $region53: #{tpu_custom_call.1} parent=1 // pred_fallthru
      _
    %367 = vsyncpa [#allocation3], 1
    %368 = vsyncpa [#allocation6], 1
    %369 = vsyncpa [#allocation9], 1
    %370 = vsyncpa [#allocation4], 1

</llo_original>
